<compile_context>
chip_gen: v6e
topology: v6e:2x2x1
jax: 0.10.0
libtpu: 0.0.40
codegen_flags: <defaults>
</compile_context>

<pallas_src>
import functools

import jax
import jax.numpy as jnp
import numpy as np
from jax.experimental import pallas as pl
from jax.experimental.pallas import tpu as pltpu


# ----------------------------------------------------------------------------
# Pallas kernel: 4 well-shaped matmuls + ReLUs (everything else pre-folded)
# ----------------------------------------------------------------------------
def fold_kernel(
    seedp_ref,   # (H, N)   seed @ (w1s*s1), transposed; batch-invariant
    f1_ref,      # (1, H, 1) per-batch: x @ (w1f*s1) + (b1*s1 + t1)
    f4_ref,      # (1, H, 1) per-batch: x @ (w4f*s3) + ((b3@w4d + b4)*s3 + t3)
    w2t_ref,     # (H2, H)  (w2*s2).T
    b2_ref,      # (H2, 1)  b2*s2 + t2
    w34t_ref,    # (H, H2)  ((w3 @ w4d)*s3).T   (conv3 fused into conv4)
    w5t_ref,     # (H2, H)  (w5*s4).T
    b5_ref,      # (H2, 1)  b5*s4 + t4
    w6t_ref,     # (3, H2)  w6.T
    b6_ref,      # (3, 1)   b6
    out_ref,     # (1, 3, N)
):
    f32 = jnp.float32

    # ---- folding1 (conv1 pre-activation precomputed; BN1/BN2 folded) -------
    h = jnp.maximum(seedp_ref[...] + f1_ref[0], 0.0)                        # (H,  N)
    h = jnp.maximum(
        jnp.dot(w2t_ref[...], h, preferred_element_type=f32) + b2_ref[...],
        0.0)                                                                # (H2, N)

    # ---- folding2 (conv3 fused into conv4; BN3/BN4 folded) ------------------
    h = jnp.maximum(
        jnp.dot(w34t_ref[...], h, preferred_element_type=f32) + f4_ref[0],
        0.0)                                                                # (H,  N)
    h = jnp.maximum(
        jnp.dot(w5t_ref[...], h, preferred_element_type=f32) + b5_ref[...],
        0.0)                                                                # (H2, N)

    out_ref[0] = (jnp.dot(w6t_ref[...], h, preferred_element_type=f32)
                  + b6_ref[...])                                            # (3,  N)


# ----------------------------------------------------------------------------
# Parameter construction (deterministic, in-script)
# ----------------------------------------------------------------------------
def make_params(key, in_channel, hidden_dim):
    h, h2 = hidden_dim, hidden_dim // 2
    ks = jax.random.split(key, 20)

    def w(k, shape, scale=0.1):
        return (scale * jax.random.normal(k, shape)).astype(jnp.float32)

    def bn(k, c):
        k1, k2, k3, k4 = jax.random.split(k, 4)
        gamma = 1.0 + 0.1 * jax.random.normal(k1, (c,))
        beta = 0.1 * jax.random.normal(k2, (c,))
        mean = 0.1 * jax.random.normal(k3, (c,))
        var = jax.random.uniform(k4, (c,), minval=0.5, maxval=1.5)
        return (gamma.astype(jnp.float32), beta.astype(jnp.float32),
                mean.astype(jnp.float32), var.astype(jnp.float32))

    p = {}
    # folding1: Conv1d(in_ch+2, H), BN(H), Conv1d(H, H/2), BN(H/2), Conv1d(H/2, 3)
    p["w1"] = w(ks[0], (in_channel + 2, h))   # channels-last weight (Cin, Cout)
    p["b1"] = w(ks[1], (h,))
    p["bn1"] = bn(ks[2], h)
    p["w2"] = w(ks[3], (h, h2))
    p["b2"] = w(ks[4], (h2,))
    p["bn2"] = bn(ks[5], h2)
    p["w3"] = w(ks[6], (h2, 3))
    p["b3"] = w(ks[7], (3,))
    # folding2: Conv1d(in_ch+3, H), BN(H), Conv1d(H, H/2), BN(H/2), Conv1d(H/2, 3)
    p["w4"] = w(ks[8], (in_channel + 3, h))
    p["b4"] = w(ks[9], (h,))
    p["bn3"] = bn(ks[10], h)
    p["w5"] = w(ks[11], (h, h2))
    p["b5"] = w(ks[12], (h2,))
    p["bn4"] = bn(ks[13], h2)
    p["w6"] = w(ks[14], (h2, 3))
    p["b6"] = w(ks[15], (3,))
    return p


def bn_affine(bn_params, eps=1e-5):
    gamma, beta, mean, var = bn_params
    scale = gamma / jnp.sqrt(var + eps)
    shift = beta - mean * scale
    return scale, shift


def make_folding_seed(step):
    lin = jnp.linspace(-1.0, 1.0, step, dtype=jnp.float32)
    a = jnp.broadcast_to(lin.reshape(1, step), (step, step)).reshape(-1)  # tiled
    b = jnp.broadcast_to(lin.reshape(step, 1), (step, step)).reshape(-1)  # repeated
    return jnp.stack([a, b], axis=0)  # (2, step*step), matches torch.cat([a, b])


# ----------------------------------------------------------------------------
# Wrapper: fold BN into weights, fuse conv3·conv4, precompute projections
# ----------------------------------------------------------------------------
def fold_forward(x, params, step, in_channel, hidden_dim):
    B = x.shape[0]
    N = step * step
    H = hidden_dim
    H2 = hidden_dim // 2

    x = x.astype(jnp.float32)
    seed = make_folding_seed(step)                      # (2, N)

    s1, t1 = bn_affine(params["bn1"])
    s2, t2 = bn_affine(params["bn2"])
    s3, t3 = bn_affine(params["bn3"])
    s4, t4 = bn_affine(params["bn4"])

    w1, b1 = params["w1"], params["b1"]
    w2, b2 = params["w2"], params["b2"]
    w3, b3 = params["w3"], params["b3"]
    w4, b4 = params["w4"], params["b4"]
    w5, b5 = params["w5"], params["b5"]
    w6, b6 = params["w6"], params["b6"]

    # conv1 + BN1 folded; concat([seed, feat]) split into two projections that
    # are computed once with plain XLA (seed part is batch-invariant).
    w1s = w1[:2] * s1[None, :]                          # (2, H)
    w1f = w1[2:] * s1[None, :]                          # (C, H)
    seedp = (seed.T @ w1s).T                            # (H, N)  channels-on-sublane
    f1 = (x @ w1f + (b1 * s1 + t1)[None, :])[:, :, None]        # (B, H, 1)

    # conv2 + BN2 folded, transposed for the (C, N) kernel layout.
    w2t = (w2 * s2[None, :]).T                          # (H2, H)
    b2c = (b2 * s2 + t2)[:, None]                       # (H2, 1)

    # conv3 fused into conv4 (fd1 is internal only) + BN3 folded.
    w34 = w3 @ w4[:3]                                   # (H2, H)
    b34 = b3 @ w4[:3]                                   # (H,)
    w34t = (w34 * s3[None, :]).T                        # (H, H2)
    f4 = (x @ (w4[3:] * s3[None, :])
          + ((b34 + b4) * s3 + t3)[None, :])[:, :, None]        # (B, H, 1)

    # conv5 + BN4 folded.
    w5t = (w5 * s4[None, :]).T                          # (H2, H)
    b5c = (b5 * s4 + t4)[:, None]                       # (H2, 1)

    # conv6 (no BN).
    w6t = w6.T                                          # (3, H2)
    b6c = b6[:, None]                                   # (3, 1)

    def const(shape):
        n = len(shape)
        return pl.BlockSpec(shape, lambda b, _n=n: (0,) * _n)

    out = pl.pallas_call(
        fold_kernel,
        grid=(B,),
        in_specs=[
            pl.BlockSpec((H, N), lambda b: (0, 0)),        # seed proj (VMEM-resident)
            pl.BlockSpec((1, H, 1), lambda b: (b, 0, 0)),  # per-batch feat proj (conv1)
            pl.BlockSpec((1, H, 1), lambda b: (b, 0, 0)),  # per-batch feat proj (conv4)
            const((H2, H)), const((H2, 1)),
            const((H, H2)),
            const((H2, H)), const((H2, 1)),
            const((3, H2)), const((3, 1)),
        ],
        out_specs=pl.BlockSpec((1, 3, N), lambda b: (b, 0, 0)),
        out_shape=jax.ShapeDtypeStruct((B, 3, N), jnp.float32),
        compiler_params=pltpu.CompilerParams(
            dimension_semantics=("parallel",)),
    )(seedp, f1, f4, w2t, b2c, w34t, w5t, b5c, w6t, b6c)

    return out                                          # (B, 3, N)  PyTorch NCL


# ----------------------------------------------------------------------------
# Pure-JAX reference (eval-mode BN, no fusions), for correctness checking
# ----------------------------------------------------------------------------
def fold_reference(x, params, step, in_channel):
    B = x.shape[0]
    N = step * step
    seed = jnp.broadcast_to(make_folding_seed(step)[None], (B, 2, N))  # (B,2,N)
    feat = jnp.broadcast_to(x[:, :, None], (B, in_channel, N))

    def conv1(z, w, b):   # z: (B, Cin, N), w: (Cin, Cout) -> (B, Cout, N)
        return jnp.einsum("bcn,ch->bhn", z, w) + b[None, :, None]

    def bn_relu(z, bnp, eps=1e-5):
        gamma, beta, mean, var = bnp
        z = (z - mean[None, :, None]) / jnp.sqrt(var + eps)[None, :, None]
        z = z * gamma[None, :, None] + beta[None, :, None]
        return jnp.maximum(z, 0.0)

    h = jnp.concatenate([seed, feat], axis=1)
    h = bn_relu(conv1(h, params["w1"], params["b1"]), params["bn1"])
    h = bn_relu(conv1(h, params["w2"], params["b2"]), params["bn2"])
    fd1 = conv1(h, params["w3"], params["b3"])

    h = jnp.concatenate([fd1, feat], axis=1)
    h = bn_relu(conv1(h, params["w4"], params["b4"]), params["bn3"])
    h = bn_relu(conv1(h, params["w5"], params["b5"]), params["bn4"])
    fd2 = conv1(h, params["w6"], params["b6"])
    return fd2


# ----------------------------------------------------------------------------
if __name__ == "__main__":
    B = 2
    IN_CHANNEL = 32
    STEP = 8            # num_sample = 64
    HIDDEN = 64

    key = jax.random.PRNGKey(0)
    kx, kp = jax.random.split(key)
    x = jax.random.normal(kx, (B, IN_CHANNEL), dtype=jnp.float32)
    params = make_params(kp, IN_CHANNEL, HIDDEN)

    run = jax.jit(functools.partial(fold_forward, step=STEP,
                                    in_channel=IN_CHANNEL, hidden_dim=HIDDEN))
    out = run(x, params)
    out = jax.block_until_ready(out)

    ref = fold_reference(x, params, STEP, IN_CHANNEL)
    ref = jax.block_until_ready(ref)

    assert out.shape == (B, 3, STEP * STEP), out.shape
    np.testing.assert_allclose(np.asarray(out), np.asarray(ref), rtol=1e-4, atol=1e-4)
    print("KERNEL_OK")
</pallas_src>

<mosaic_0001>
module attributes {stable_mosaic.version = 11 : i64} {
  func.func @fold_kernel(%arg0: i32, %arg1: memref<64x64xf32, #tpu.memory_space<vmem>>, %arg2: memref<1x64x1xf32, #tpu.memory_space<vmem>>, %arg3: memref<1x64x1xf32, #tpu.memory_space<vmem>>, %arg4: memref<32x64xf32, #tpu.memory_space<vmem>>, %arg5: memref<32x1xf32, #tpu.memory_space<vmem>>, %arg6: memref<64x32xf32, #tpu.memory_space<vmem>>, %arg7: memref<32x64xf32, #tpu.memory_space<vmem>>, %arg8: memref<32x1xf32, #tpu.memory_space<vmem>>, %arg9: memref<3x32xf32, #tpu.memory_space<vmem>>, %arg10: memref<3x1xf32, #tpu.memory_space<vmem>>, %arg11: memref<1x3x64xf32, #tpu.memory_space<vmem>>) attributes {dimension_semantics = [#tpu.dimension_semantics<parallel>], iteration_bounds = array<i64: 2>, scalar_prefetch = 0 : i64, scratch_operands = 0 : i64, tpu.core_type = #tpu.core_type<tc>, window_params = [{pipeline_mode = #tpu.pipeline_mode<synchronous>, transform_indices = @transform_0, window_bounds = array<i64: 64, 64>}, {transform_indices = @transform_1, window_bounds = array<i64: 1, 64, 1>}, {transform_indices = @transform_2, window_bounds = array<i64: 1, 64, 1>}, {pipeline_mode = #tpu.pipeline_mode<synchronous>, transform_indices = @transform_3, window_bounds = array<i64: 32, 64>}, {pipeline_mode = #tpu.pipeline_mode<synchronous>, transform_indices = @transform_4, window_bounds = array<i64: 32, 1>}, {pipeline_mode = #tpu.pipeline_mode<synchronous>, transform_indices = @transform_5, window_bounds = array<i64: 64, 32>}, {pipeline_mode = #tpu.pipeline_mode<synchronous>, transform_indices = @transform_6, window_bounds = array<i64: 32, 64>}, {pipeline_mode = #tpu.pipeline_mode<synchronous>, transform_indices = @transform_7, window_bounds = array<i64: 32, 1>}, {pipeline_mode = #tpu.pipeline_mode<synchronous>, transform_indices = @transform_8, window_bounds = array<i64: 3, 32>}, {pipeline_mode = #tpu.pipeline_mode<synchronous>, transform_indices = @transform_9, window_bounds = array<i64: 3, 1>}, {transform_indices = @transform_10, window_bounds = array<i64: 1, 3, 64>}]} {
    %c0 = arith.constant 0 : index
    %c0_0 = arith.constant 0 : index
    %0 = vector.load %arg1[%c0, %c0_0] : memref<64x64xf32, #tpu.memory_space<vmem>>, vector<64x64xf32>
    %c0_1 = arith.constant 0 : index
    %c0_2 = arith.constant 0 : index
    %c0_3 = arith.constant 0 : index
    %1 = vector.load %arg2[%c0_1, %c0_2, %c0_3] : memref<1x64x1xf32, #tpu.memory_space<vmem>>, vector<1x64x1xf32>
    %2 = vector.shape_cast %1 : vector<1x64x1xf32> to vector<64x1xf32>
    %3 = vector.broadcast %2 : vector<64x1xf32> to vector<64x64xf32>
    %4 = arith.addf %0, %3 : vector<64x64xf32>
    %cst = arith.constant 0.000000e+00 : f32
    %5 = vector.broadcast %cst : f32 to vector<64x64xf32>
    %6 = arith.maximumf %4, %5 : vector<64x64xf32>
    %c0_4 = arith.constant 0 : index
    %c0_5 = arith.constant 0 : index
    %7 = vector.load %arg4[%c0_4, %c0_5] : memref<32x64xf32, #tpu.memory_space<vmem>>, vector<32x64xf32>
    %cst_6 = arith.constant dense<0.000000e+00> : vector<32x64xf32>
    %8 = tpu.matmul %7, %6, %cst_6 {dimension_numbers = #tpu.dot_dimension_numbers<[1], [0], [0], [1], [0, 0, 1, 1], [], []>} : vector<32x64xf32>, vector<64x64xf32>, vector<32x64xf32> -> vector<32x64xf32>
    %c0_7 = arith.constant 0 : index
    %c0_8 = arith.constant 0 : index
    %9 = vector.load %arg5[%c0_7, %c0_8] : memref<32x1xf32, #tpu.memory_space<vmem>>, vector<32x1xf32>
    %10 = vector.broadcast %9 : vector<32x1xf32> to vector<32x64xf32>
    %11 = arith.addf %8, %10 : vector<32x64xf32>
    %cst_9 = arith.constant 0.000000e+00 : f32
    %12 = vector.broadcast %cst_9 : f32 to vector<32x64xf32>
    %13 = arith.maximumf %11, %12 : vector<32x64xf32>
    %c0_10 = arith.constant 0 : index
    %c0_11 = arith.constant 0 : index
    %14 = vector.load %arg6[%c0_10, %c0_11] : memref<64x32xf32, #tpu.memory_space<vmem>>, vector<64x32xf32>
    %cst_12 = arith.constant dense<0.000000e+00> : vector<64x64xf32>
    %15 = tpu.matmul %14, %13, %cst_12 {dimension_numbers = #tpu.dot_dimension_numbers<[1], [0], [0], [1], [0, 0, 1, 1], [], []>} : vector<64x32xf32>, vector<32x64xf32>, vector<64x64xf32> -> vector<64x64xf32>
    %c0_13 = arith.constant 0 : index
    %c0_14 = arith.constant 0 : index
    %c0_15 = arith.constant 0 : index
    %16 = vector.load %arg3[%c0_13, %c0_14, %c0_15] : memref<1x64x1xf32, #tpu.memory_space<vmem>>, vector<1x64x1xf32>
    %17 = vector.shape_cast %16 : vector<1x64x1xf32> to vector<64x1xf32>
    %18 = vector.broadcast %17 : vector<64x1xf32> to vector<64x64xf32>
    %19 = arith.addf %15, %18 : vector<64x64xf32>
    %cst_16 = arith.constant 0.000000e+00 : f32
    %20 = vector.broadcast %cst_16 : f32 to vector<64x64xf32>
    %21 = arith.maximumf %19, %20 : vector<64x64xf32>
    %c0_17 = arith.constant 0 : index
    %c0_18 = arith.constant 0 : index
    %22 = vector.load %arg7[%c0_17, %c0_18] : memref<32x64xf32, #tpu.memory_space<vmem>>, vector<32x64xf32>
    %cst_19 = arith.constant dense<0.000000e+00> : vector<32x64xf32>
    %23 = tpu.matmul %22, %21, %cst_19 {dimension_numbers = #tpu.dot_dimension_numbers<[1], [0], [0], [1], [0, 0, 1, 1], [], []>} : vector<32x64xf32>, vector<64x64xf32>, vector<32x64xf32> -> vector<32x64xf32>
    %c0_20 = arith.constant 0 : index
    %c0_21 = arith.constant 0 : index
    %24 = vector.load %arg8[%c0_20, %c0_21] : memref<32x1xf32, #tpu.memory_space<vmem>>, vector<32x1xf32>
    %25 = vector.broadcast %24 : vector<32x1xf32> to vector<32x64xf32>
    %26 = arith.addf %23, %25 : vector<32x64xf32>
    %cst_22 = arith.constant 0.000000e+00 : f32
    %27 = vector.broadcast %cst_22 : f32 to vector<32x64xf32>
    %28 = arith.maximumf %26, %27 : vector<32x64xf32>
    %c0_23 = arith.constant 0 : index
    %c0_24 = arith.constant 0 : index
    %29 = vector.load %arg9[%c0_23, %c0_24] : memref<3x32xf32, #tpu.memory_space<vmem>>, vector<3x32xf32>
    %cst_25 = arith.constant dense<0.000000e+00> : vector<3x64xf32>
    %30 = tpu.matmul %29, %28, %cst_25 {dimension_numbers = #tpu.dot_dimension_numbers<[1], [0], [0], [1], [0, 0, 1, 1], [], []>} : vector<3x32xf32>, vector<32x64xf32>, vector<3x64xf32> -> vector<3x64xf32>
    %c0_26 = arith.constant 0 : index
    %c0_27 = arith.constant 0 : index
    %31 = vector.load %arg10[%c0_26, %c0_27] : memref<3x1xf32, #tpu.memory_space<vmem>>, vector<3x1xf32>
    %32 = vector.broadcast %31 : vector<3x1xf32> to vector<3x64xf32>
    %33 = arith.addf %30, %32 : vector<3x64xf32>
    %c0_28 = arith.constant 0 : index
    %c0_29 = arith.constant 0 : index
    %c0_30 = arith.constant 0 : index
    %34 = vector.load %arg11[%c0_28, %c0_29, %c0_30] : memref<1x3x64xf32, #tpu.memory_space<vmem>>, vector<1x3x64xf32>
    %35 = vector.shape_cast %34 : vector<1x3x64xf32> to vector<3x64xf32>
    %36 = vector.shape_cast %33 : vector<3x64xf32> to vector<1x3x64xf32>
    tpu.vector_store %arg11[%c0_28, %c0_29, %c0_30], %36 {strides = array<i32>} : memref<1x3x64xf32, #tpu.memory_space<vmem>>, vector<1x3x64xf32>,
    return
  }
  func.func @transform_0(%arg0: i32) -> (i32, i32) {
    %c0_i32 = arith.constant 0 : i32
    %c0_i32_0 = arith.constant 0 : i32
    %c0_i32_1 = arith.constant 0 : i32
    return %c0_i32, %c0_i32_0 : i32, i32
  }
  func.func @transform_1(%arg0: i32) -> (i32, i32, i32) {
    %c0_i32 = arith.constant 0 : i32
    %c0_i32_0 = arith.constant 0 : i32
    %c0_i32_1 = arith.constant 0 : i32
    return %arg0, %c0_i32, %c0_i32_0 : i32, i32, i32
  }
  func.func @transform_2(%arg0: i32) -> (i32, i32, i32) {
    %c0_i32 = arith.constant 0 : i32
    %c0_i32_0 = arith.constant 0 : i32
    %c0_i32_1 = arith.constant 0 : i32
    return %arg0, %c0_i32, %c0_i32_0 : i32, i32, i32
  }
  func.func @transform_3(%arg0: i32) -> (i32, i32) {
    %c0_i32 = arith.constant 0 : i32
    %c0_i32_0 = arith.constant 0 : i32
    %c0_i32_1 = arith.constant 0 : i32
    return %c0_i32, %c0_i32_0 : i32, i32
  }
  func.func @transform_4(%arg0: i32) -> (i32, i32) {
    %c0_i32 = arith.constant 0 : i32
    %c0_i32_0 = arith.constant 0 : i32
    %c0_i32_1 = arith.constant 0 : i32
    return %c0_i32, %c0_i32_0 : i32, i32
  }
  func.func @transform_5(%arg0: i32) -> (i32, i32) {
    %c0_i32 = arith.constant 0 : i32
    %c0_i32_0 = arith.constant 0 : i32
    %c0_i32_1 = arith.constant 0 : i32
    return %c0_i32, %c0_i32_0 : i32, i32
  }
  func.func @transform_6(%arg0: i32) -> (i32, i32) {
    %c0_i32 = arith.constant 0 : i32
    %c0_i32_0 = arith.constant 0 : i32
    %c0_i32_1 = arith.constant 0 : i32
    return %c0_i32, %c0_i32_0 : i32, i32
  }
  func.func @transform_7(%arg0: i32) -> (i32, i32) {
    %c0_i32 = arith.constant 0 : i32
    %c0_i32_0 = arith.constant 0 : i32
    %c0_i32_1 = arith.constant 0 : i32
    return %c0_i32, %c0_i32_0 : i32, i32
  }
  func.func @transform_8(%arg0: i32) -> (i32, i32) {
    %c0_i32 = arith.constant 0 : i32
    %c0_i32_0 = arith.constant 0 : i32
    %c0_i32_1 = arith.constant 0 : i32
    return %c0_i32, %c0_i32_0 : i32, i32
  }
  func.func @transform_9(%arg0: i32) -> (i32, i32) {
    %c0_i32 = arith.constant 0 : i32
    %c0_i32_0 = arith.constant 0 : i32
    %c0_i32_1 = arith.constant 0 : i32
    return %c0_i32, %c0_i32_0 : i32, i32
  }
  func.func @transform_10(%arg0: i32) -> (i32, i32, i32) {
    %c0_i32 = arith.constant 0 : i32
    %c0_i32_0 = arith.constant 0 : i32
    %c0_i32_1 = arith.constant 0 : i32
    return %arg0, %c0_i32, %c0_i32_0 : i32, i32, i32
  }
}

</mosaic_0001>

<llo_original>
// kernel: fold_forward.1
$region0: #{fold_forward.1}
  #allocation0 [shape = 'u32[]', space=smem, size = 0x4, offset = 0x4, fixed_abs, tag = 'smem constant byte address 0x4 - core index']
  #allocation1 [shape = 'u32[144,128]{1,0:T(1,128)}', space=vmem, size = 0x12000, scoped, tag = 'internal scratch']
  %s0 = inlined_call_operand.vmem [shape: f32[64,64], index: 0, kind: input, shape index: {}]
  %s1 = inlined_call_operand.vmem [shape: f32[2,64,1], index: 1, kind: input, shape index: {}]
  %s2 = inlined_call_operand.vmem [shape: f32[2,64,1], index: 2, kind: input, shape index: {}]
  %s3 = inlined_call_operand.vmem [shape: f32[32,64], index: 3, kind: input, shape index: {}]
  %s4 = inlined_call_operand.vmem [shape: f32[32,1], index: 4, kind: input, shape index: {}]
  %s5 = inlined_call_operand.vmem [shape: f32[64,32], index: 5, kind: input, shape index: {}]
  %s6 = inlined_call_operand.vmem [shape: f32[32,64], index: 6, kind: input, shape index: {}]
  %s7 = inlined_call_operand.vmem [shape: f32[32,1], index: 7, kind: input, shape index: {}]
  %s8 = inlined_call_operand.vmem [shape: f32[3,32], index: 8, kind: input, shape index: {}]
  %s9 = inlined_call_operand.vmem [shape: f32[3,1], index: 9, kind: input, shape index: {}]
  %s10 = inlined_call_operand.vmem [shape: f32[2,3,64], index: 10, kind: output, shape index: {}]
  %s11 = sld [smem:[#allocation0]]
  $region73: #{fold_forward.1} parent=0
    _
  %s13 = ssub.s32 1, %s11
  %s14 = scalar_select 0, %s13, %s11
  loop: start=0, step=1, limit=4
  $region2: #{fold_forward.1} parent=0 // loop_pre_header
    _
  $region3: #{fold_forward.1} parent=0 // loop_header
    %s16 = sphi 0, %s20
    %p17 = scmp.ge.s32.totalorder %s16, 4
    %s24 = sphi 0, %s24
    %s26 = sphi 0, %s24
    %s27 = sphi 0, %s26
    %s41 = sphi 0, %s27
    %s47 = sphi 0, %s49
    %s50 = sphi 0, %s47
    %s51 = sphi 0, %s50
    %s67 = sphi 0, %s51
    %s73 = sphi 0, %s75
    %s76 = sphi 0, %s73
    %s77 = sphi 0, %s76
    %s93 = sphi 0, %s77
    %s97 = sphi 0, %s97
    %s99 = sphi 0, %s97
    %s100 = sphi 0, %s99
    %s114 = sphi 0, %s100
    %s118 = sphi 0, %s118
    %s120 = sphi 0, %s118
    %s121 = sphi 0, %s120
    %s135 = sphi 0, %s121
    %s139 = sphi 0, %s139
    %s141 = sphi 0, %s139
    %s142 = sphi 0, %s141
    %s156 = sphi 0, %s142
    %s160 = sphi 0, %s160
    %s162 = sphi 0, %s160
    %s163 = sphi 0, %s162
    %s177 = sphi 0, %s163
    %s181 = sphi 0, %s181
    %s183 = sphi 0, %s181
    %s184 = sphi 0, %s183
    %s198 = sphi 0, %s184
    %s202 = sphi 0, %s202
    %s204 = sphi 0, %s202
    %s205 = sphi 0, %s204
    %s219 = sphi 0, %s205
    %s223 = sphi 0, %s223
    %s225 = sphi 0, %s223
    %s226 = sphi 0, %s225
    %s240 = sphi 0, %s226
    %s246 = sphi 0, %s248
    %s249 = sphi 0, %s246
    %s250 = sphi 0, %s249
    %s266 = sphi 0, %s250
  $region4: #{fold_forward.1} parent=0 // loop_header_branch
    %19 = sbr.rel (%p17) target = $region8
  $region5: #{fold_forward.1} parent=0 // loop_body
    %s21 = ssub.s32 %s16, 1
    %s22 = ssub.s32 %s16, 2
    %s23 = sadd.s32 %s16, 1
    %s25 = sadd.s32 %s24, 1
    %p28 = scmp.eq.s32.totalorder %s16, 1
    %p29 = scmp.ne.s32.totalorder %s24, %s26
    %p30 = scmp.eq.s32.totalorder %s16, 0
    %p31 = por %p29, %p30
    %p32 = scmp.ne.s32.totalorder %s24, %s26
    %p33 = scmp.eq.s32.totalorder %s21, 1
    %p34 = por %p32, %p33
    %p35 = scmp.ne.s32.totalorder %s26, %s27
    %p36 = scmp.eq.s32.totalorder %s21, 0
    %p37 = por %p35, %p36
    %p38 = scmp.ne.s32.totalorder %s26, %s27
    %p39 = scmp.eq.s32.totalorder %s22, 1
    %p40 = por %p38, %p39
    %p42 = scmp.ne.s32.totalorder %s27, %s41
    %p43 = scmp.eq.s32.totalorder %s22, 0
    %p44 = por %p42, %p43
    %s45 = ssub.s32 %s16, %s23
    %p46 = scmp.eq.s32.totalorder %s45, 0
    %s48 = sadd.s32 %s47, 1
    %s49 = scalar_select %p46, %s47, %s48
    %p52 = pneg %p46
    %p53 = scmp.eq.s32.totalorder %s16, 1
    %p54 = por %p52, %p53
    %p55 = scmp.ne.s32.totalorder %s47, %s50
    %p56 = scmp.eq.s32.totalorder %s16, 0
    %p57 = por %p55, %p56
    %p58 = scmp.ne.s32.totalorder %s47, %s50
    %p59 = scmp.eq.s32.totalorder %s21, 1
    %p60 = por %p58, %p59
    %p61 = scmp.ne.s32.totalorder %s50, %s51
    %p62 = scmp.eq.s32.totalorder %s21, 0
    %p63 = por %p61, %p62
    %p64 = scmp.ne.s32.totalorder %s50, %s51
    %p65 = scmp.eq.s32.totalorder %s22, 1
    %p66 = por %p64, %p65
    %p68 = scmp.ne.s32.totalorder %s51, %s67
    %p69 = scmp.eq.s32.totalorder %s22, 0
    %p70 = por %p68, %p69
    %s71 = ssub.s32 %s16, %s23
    %p72 = scmp.eq.s32.totalorder %s71, 0
    %s74 = sadd.s32 %s73, 1
    %s75 = scalar_select %p72, %s73, %s74
    %p78 = pneg %p72
    %p79 = scmp.eq.s32.totalorder %s16, 1
    %p80 = por %p78, %p79
    %p81 = scmp.ne.s32.totalorder %s73, %s76
    %p82 = scmp.eq.s32.totalorder %s16, 0
    %p83 = por %p81, %p82
    %p84 = scmp.ne.s32.totalorder %s73, %s76
    %p85 = scmp.eq.s32.totalorder %s21, 1
    %p86 = por %p84, %p85
    %p87 = scmp.ne.s32.totalorder %s76, %s77
    %p88 = scmp.eq.s32.totalorder %s21, 0
    %p89 = por %p87, %p88
    %p90 = scmp.ne.s32.totalorder %s76, %s77
    %p91 = scmp.eq.s32.totalorder %s22, 1
    %p92 = por %p90, %p91
    %p94 = scmp.ne.s32.totalorder %s77, %s93
    %p95 = scmp.eq.s32.totalorder %s22, 0
    %p96 = por %p94, %p95
    %s98 = sadd.s32 %s97, 1
    %p101 = scmp.eq.s32.totalorder %s16, 1
    %p102 = scmp.ne.s32.totalorder %s97, %s99
    %p103 = scmp.eq.s32.totalorder %s16, 0
    %p104 = por %p102, %p103
    %p105 = scmp.ne.s32.totalorder %s97, %s99
    %p106 = scmp.eq.s32.totalorder %s21, 1
    %p107 = por %p105, %p106
    %p108 = scmp.ne.s32.totalorder %s99, %s100
    %p109 = scmp.eq.s32.totalorder %s21, 0
    %p110 = por %p108, %p109
    %p111 = scmp.ne.s32.totalorder %s99, %s100
    %p112 = scmp.eq.s32.totalorder %s22, 1
    %p113 = por %p111, %p112
    %p115 = scmp.ne.s32.totalorder %s100, %s114
    %p116 = scmp.eq.s32.totalorder %s22, 0
    %p117 = por %p115, %p116
    %s119 = sadd.s32 %s118, 1
    %p122 = scmp.eq.s32.totalorder %s16, 1
    %p123 = scmp.ne.s32.totalorder %s118, %s120
    %p124 = scmp.eq.s32.totalorder %s16, 0
    %p125 = por %p123, %p124
    %p126 = scmp.ne.s32.totalorder %s118, %s120
    %p127 = scmp.eq.s32.totalorder %s21, 1
    %p128 = por %p126, %p127
    %p129 = scmp.ne.s32.totalorder %s120, %s121
    %p130 = scmp.eq.s32.totalorder %s21, 0
    %p131 = por %p129, %p130
    %p132 = scmp.ne.s32.totalorder %s120, %s121
    %p133 = scmp.eq.s32.totalorder %s22, 1
    %p134 = por %p132, %p133
    %p136 = scmp.ne.s32.totalorder %s121, %s135
    %p137 = scmp.eq.s32.totalorder %s22, 0
    %p138 = por %p136, %p137
    %s140 = sadd.s32 %s139, 1
    %p143 = scmp.eq.s32.totalorder %s16, 1
    %p144 = scmp.ne.s32.totalorder %s139, %s141
    %p145 = scmp.eq.s32.totalorder %s16, 0
    %p146 = por %p144, %p145
    %p147 = scmp.ne.s32.totalorder %s139, %s141
    %p148 = scmp.eq.s32.totalorder %s21, 1
    %p149 = por %p147, %p148
    %p150 = scmp.ne.s32.totalorder %s141, %s142
    %p151 = scmp.eq.s32.totalorder %s21, 0
    %p152 = por %p150, %p151
    %p153 = scmp.ne.s32.totalorder %s141, %s142
    %p154 = scmp.eq.s32.totalorder %s22, 1
    %p155 = por %p153, %p154
    %p157 = scmp.ne.s32.totalorder %s142, %s156
    %p158 = scmp.eq.s32.totalorder %s22, 0
    %p159 = por %p157, %p158
    %s161 = sadd.s32 %s160, 1
    %p164 = scmp.eq.s32.totalorder %s16, 1
    %p165 = scmp.ne.s32.totalorder %s160, %s162
    %p166 = scmp.eq.s32.totalorder %s16, 0
    %p167 = por %p165, %p166
    %p168 = scmp.ne.s32.totalorder %s160, %s162
    %p169 = scmp.eq.s32.totalorder %s21, 1
    %p170 = por %p168, %p169
    %p171 = scmp.ne.s32.totalorder %s162, %s163
    %p172 = scmp.eq.s32.totalorder %s21, 0
    %p173 = por %p171, %p172
    %p174 = scmp.ne.s32.totalorder %s162, %s163
    %p175 = scmp.eq.s32.totalorder %s22, 1
    %p176 = por %p174, %p175
    %p178 = scmp.ne.s32.totalorder %s163, %s177
    %p179 = scmp.eq.s32.totalorder %s22, 0
    %p180 = por %p178, %p179
    %s182 = sadd.s32 %s181, 1
    %p185 = scmp.eq.s32.totalorder %s16, 1
    %p186 = scmp.ne.s32.totalorder %s181, %s183
    %p187 = scmp.eq.s32.totalorder %s16, 0
    %p188 = por %p186, %p187
    %p189 = scmp.ne.s32.totalorder %s181, %s183
    %p190 = scmp.eq.s32.totalorder %s21, 1
    %p191 = por %p189, %p190
    %p192 = scmp.ne.s32.totalorder %s183, %s184
    %p193 = scmp.eq.s32.totalorder %s21, 0
    %p194 = por %p192, %p193
    %p195 = scmp.ne.s32.totalorder %s183, %s184
    %p196 = scmp.eq.s32.totalorder %s22, 1
    %p197 = por %p195, %p196
    %p199 = scmp.ne.s32.totalorder %s184, %s198
    %p200 = scmp.eq.s32.totalorder %s22, 0
    %p201 = por %p199, %p200
    %s203 = sadd.s32 %s202, 1
    %p206 = scmp.eq.s32.totalorder %s16, 1
    %p207 = scmp.ne.s32.totalorder %s202, %s204
    %p208 = scmp.eq.s32.totalorder %s16, 0
    %p209 = por %p207, %p208
    %p210 = scmp.ne.s32.totalorder %s202, %s204
    %p211 = scmp.eq.s32.totalorder %s21, 1
    %p212 = por %p210, %p211
    %p213 = scmp.ne.s32.totalorder %s204, %s205
    %p214 = scmp.eq.s32.totalorder %s21, 0
    %p215 = por %p213, %p214
    %p216 = scmp.ne.s32.totalorder %s204, %s205
    %p217 = scmp.eq.s32.totalorder %s22, 1
    %p218 = por %p216, %p217
    %p220 = scmp.ne.s32.totalorder %s205, %s219
    %p221 = scmp.eq.s32.totalorder %s22, 0
    %p222 = por %p220, %p221
    %s224 = sadd.s32 %s223, 1
    %p227 = scmp.eq.s32.totalorder %s16, 1
    %p228 = scmp.ne.s32.totalorder %s223, %s225
    %p229 = scmp.eq.s32.totalorder %s16, 0
    %p230 = por %p228, %p229
    %p231 = scmp.ne.s32.totalorder %s223, %s225
    %p232 = scmp.eq.s32.totalorder %s21, 1
    %p233 = por %p231, %p232
    %p234 = scmp.ne.s32.totalorder %s225, %s226
    %p235 = scmp.eq.s32.totalorder %s21, 0
    %p236 = por %p234, %p235
    %p237 = scmp.ne.s32.totalorder %s225, %s226
    %p238 = scmp.eq.s32.totalorder %s22, 1
    %p239 = por %p237, %p238
    %p241 = scmp.ne.s32.totalorder %s226, %s240
    %p242 = scmp.eq.s32.totalorder %s22, 0
    %p243 = por %p241, %p242
    %s244 = ssub.s32 %s16, %s23
    %p245 = scmp.eq.s32.totalorder %s244, 0
    %s247 = sadd.s32 %s246, 1
    %s248 = scalar_select %p245, %s246, %s247
    %p251 = pneg %p245
    %p252 = scmp.eq.s32.totalorder %s16, 1
    %p253 = por %p251, %p252
    %p254 = scmp.ne.s32.totalorder %s246, %s249
    %p255 = scmp.eq.s32.totalorder %s16, 0
    %p256 = por %p254, %p255
    %p257 = scmp.ne.s32.totalorder %s246, %s249
    %p258 = scmp.eq.s32.totalorder %s21, 1
    %p259 = por %p257, %p258
    %p260 = scmp.ne.s32.totalorder %s249, %s250
    %p261 = scmp.eq.s32.totalorder %s21, 0
    %p262 = por %p260, %p261
    %p263 = scmp.ne.s32.totalorder %s249, %s250
    %p264 = scmp.eq.s32.totalorder %s22, 1
    %p265 = por %p263, %p264
    %p267 = scmp.ne.s32.totalorder %s250, %s266
    %p268 = scmp.eq.s32.totalorder %s22, 0
    %p269 = por %p267, %p268
    %p270 = scmp.le.s32.totalorder 1, %s16
    %p271 = scmp.lt.s32.totalorder %s16, 3
    %p272 = pnand %p270, %p271
    %p273 = pneg %p272
    // Predicated region
    $region9: #{fold_forward.1} parent=5 // pred_check
      _
    $region10: #{fold_forward.1} parent=5 // pred_check_branch
      %275 = sbr.rel (%p272) target = $region12
    $region11: #{fold_forward.1} parent=5 // pred_region
      %s276 = ssub.s32 %s16, 1
      // Predicated region
      $region13: #{fold_forward.1} parent=11 // pred_check
        %p277 = pneg %p37
      $region14: #{fold_forward.1} parent=11 // pred_check_branch
        %279 = sbr.rel (%p277) target = $region16
      $region15: #{fold_forward.1} parent=11 // pred_region
        _
      $region16: #{fold_forward.1} parent=11 // pred_fallthru
        _
      // Predicated region
      $region17: #{fold_forward.1} parent=11 // pred_check
        %p280 = pneg %p110
      $region18: #{fold_forward.1} parent=11 // pred_check_branch
        %282 = sbr.rel (%p280) target = $region20
      $region19: #{fold_forward.1} parent=11 // pred_region
        _
      $region20: #{fold_forward.1} parent=11 // pred_fallthru
        _
      // Predicated region
      $region21: #{fold_forward.1} parent=11 // pred_check
        %p283 = pneg %p131
      $region22: #{fold_forward.1} parent=11 // pred_check_branch
        %285 = sbr.rel (%p283) target = $region24
      $region23: #{fold_forward.1} parent=11 // pred_region
        _
      $region24: #{fold_forward.1} parent=11 // pred_fallthru
        _
      // Predicated region
      $region25: #{fold_forward.1} parent=11 // pred_check
        %p286 = pneg %p152
      $region26: #{fold_forward.1} parent=11 // pred_check_branch
        %288 = sbr.rel (%p286) target = $region28
      $region27: #{fold_forward.1} parent=11 // pred_region
        _
      $region28: #{fold_forward.1} parent=11 // pred_fallthru
        _
      // Predicated region
      $region29: #{fold_forward.1} parent=11 // pred_check
        %p289 = pneg %p173
      $region30: #{fold_forward.1} parent=11 // pred_check_branch
        %291 = sbr.rel (%p289) target = $region32
      $region31: #{fold_forward.1} parent=11 // pred_region
        _
      $region32: #{fold_forward.1} parent=11 // pred_fallthru
        _
      // Predicated region
      $region33: #{fold_forward.1} parent=11 // pred_check
        %p292 = pneg %p194
      $region34: #{fold_forward.1} parent=11 // pred_check_branch
        %294 = sbr.rel (%p292) target = $region36
      $region35: #{fold_forward.1} parent=11 // pred_region
        _
      $region36: #{fold_forward.1} parent=11 // pred_fallthru
        _
      // Predicated region
      $region37: #{fold_forward.1} parent=11 // pred_check
        %p295 = pneg %p215
      $region38: #{fold_forward.1} parent=11 // pred_check_branch
        %297 = sbr.rel (%p295) target = $region40
      $region39: #{fold_forward.1} parent=11 // pred_region
        _
      $region40: #{fold_forward.1} parent=11 // pred_fallthru
        _
      // Predicated region
      $region41: #{fold_forward.1} parent=11 // pred_check
        %p298 = pneg %p236
      $region42: #{fold_forward.1} parent=11 // pred_check_branch
        %300 = sbr.rel (%p298) target = $region44
      $region43: #{fold_forward.1} parent=11 // pred_region
        _
      $region44: #{fold_forward.1} parent=11 // pred_fallthru
        _
    $region12: #{fold_forward.1} parent=5 // pred_fallthru
      _
    %p301 = scmp.lt.s32.totalorder %s16, 2
    // Predicated region
    $region45: #{fold_forward.1} parent=5 // pred_check
      %p302 = pneg %p301
    $region46: #{fold_forward.1} parent=5 // pred_check_branch
      %304 = sbr.rel (%p302) target = $region48
    $region47: #{fold_forward.1} parent=5 // pred_region
      // Predicated region
      $region49: #{fold_forward.1} parent=47 // pred_check
        %p305 = pneg %p57
      $region50: #{fold_forward.1} parent=47 // pred_check_branch
        %307 = sbr.rel (%p305) target = $region52
      $region51: #{fold_forward.1} parent=47 // pred_region
        %p308 = scmp.lt.s32.totalorder %s16, 1
        %s309 = scalar_select %p308, %s16, 1
        %s310 = smul.addr %s309, 8
        %s311 = smul.addr %s310, 8
        %s312 = scalar_lea.vmem %s1, %s311
      $region52: #{fold_forward.1} parent=47 // pred_fallthru
        _
      // Predicated region
      $region53: #{fold_forward.1} parent=47 // pred_check
        %p313 = pneg %p83
      $region54: #{fold_forward.1} parent=47 // pred_check_branch
        %315 = sbr.rel (%p313) target = $region56
      $region55: #{fold_forward.1} parent=47 // pred_region
        %p316 = scmp.lt.s32.totalorder %s16, 1
        %s317 = scalar_select %p316, %s16, 1
        %s318 = smul.addr %s317, 8
        %s319 = smul.addr %s318, 8
        %s320 = scalar_lea.vmem %s2, %s319
      $region56: #{fold_forward.1} parent=47 // pred_fallthru
        _
    $region48: #{fold_forward.1} parent=5 // pred_fallthru
      _
    %p321 = scmp.le.s32.totalorder 1, %s16
    %p322 = scmp.lt.s32.totalorder %s16, 3
    %p323 = pnand %p321, %p322
    %p324 = pneg %p323
    // Predicated region
    $region57: #{fold_forward.1} parent=5 // pred_check
      _
    $region58: #{fold_forward.1} parent=5 // pred_check_branch
      %326 = sbr.rel (%p323) target = $region60
    $region59: #{fold_forward.1} parent=5 // pred_region
      %s327 = ssub.s32 %s16, 1
      %p328 = pneg %p37
      %p329 = pneg %p34
      %p330 = scmp.lt.s32.totalorder %s21, 1
      %s331 = scalar_select %p330, %s21, 1
      %s332 = smul.addr %s331, 8
      %s333 = smul.addr %s332, 8
      %s334 = scalar_lea.vmem %s1, %s333
      %p335 = pneg %p63
      %p336 = pneg %p60
      %p337 = scmp.lt.s32.totalorder %s21, 1
      %s338 = scalar_select %p337, %s21, 1
      %s339 = smul.addr %s338, 8
      %s340 = smul.addr %s339, 8
      %s341 = scalar_lea.vmem %s2, %s340
      %p342 = pneg %p89
      %p343 = pneg %p86
      %p344 = pneg %p110
      %p345 = pneg %p107
      %p346 = pneg %p131
      %p347 = pneg %p128
      %p348 = pneg %p152
      %p349 = pneg %p149
      %p350 = pneg %p173
      %p351 = pneg %p170
      %p352 = pneg %p194
      %p353 = pneg %p191
      %p354 = pneg %p215
      %p355 = pneg %p212
      %p356 = pneg %p236
      %p357 = pneg %p233
      %p358 = pneg %p262
      %p359 = pneg %p259
      %p360 = scmp.lt.s32.totalorder %s21, 1
      %s361 = scalar_select %p360, %s21, 1
      %s362 = smul.addr %s361, 4
      %s363 = scalar_lea.vmem %s10, %s362
      %p364 = scmp.lt.s32.totalorder %s21, 1
      %s365 = scalar_select %p364, %s21, 1
      %s366 = smul.addr %s365, 8
      %s367 = smul.addr %s366, 8
      %s368 = scalar_lea.vmem %s1, %s367
      %p369 = scmp.lt.s32.totalorder %s21, 1
      %s370 = scalar_select %p369, %s21, 1
      %s371 = smul.addr %s370, 8
      %s372 = smul.addr %s371, 8
      %s373 = scalar_lea.vmem %s2, %s372
      %p374 = scmp.lt.s32.totalorder %s21, 1
      %s375 = scalar_select %p374, %s21, 1
      %s376 = smul.addr %s375, 4
      %s377 = scalar_lea.vmem %s10, %s376
      %v378 = vld [vmem:[%s0] sm:$0xff]
      %v379 = vld [vmem:[%s0 + $0x8] sm:$0xff]
      %v380 = vld [vmem:[%s0 + $0x10] sm:$0xff]
      %v381 = vld [vmem:[%s0 + $0x18] sm:$0xff]
      %v382 = vld [vmem:[%s0 + $0x20] sm:$0xff]
      %v383 = vld [vmem:[%s0 + $0x28] sm:$0xff]
      %v384 = vld [vmem:[%s0 + $0x30] sm:$0xff]
      %v385 = vld [vmem:[%s0 + $0x38] sm:$0xff]
      %v386 = vld [vmem:[%s368] sm:$0xff]
      %v387 = vld [vmem:[%s368 + $0x8] sm:$0xff]
      %v388 = vld [vmem:[%s368 + $0x10] sm:$0xff]
      %v389 = vld [vmem:[%s368 + $0x18] sm:$0xff]
      %v390 = vld [vmem:[%s368 + $0x20] sm:$0xff]
      %v391 = vld [vmem:[%s368 + $0x28] sm:$0xff]
      %v392 = vld [vmem:[%s368 + $0x30] sm:$0xff]
      %v393 = vld [vmem:[%s368 + $0x38] sm:$0xff]
      %395 = vset.pattern.permute.xlu0 0
      %396 = vperm.xlu0 %395, %v386
      %v397 = vpop.permute.xlu0 %396
      %400 = vset.pattern.permute.xlu0 0
      %401 = vperm.xlu0 %400, %v387
      %v402 = vpop.permute.xlu0 %401
      %405 = vset.pattern.permute.xlu0 0
      %406 = vperm.xlu0 %405, %v388
      %v407 = vpop.permute.xlu0 %406
      %410 = vset.pattern.permute.xlu0 0
      %411 = vperm.xlu0 %410, %v389
      %v412 = vpop.permute.xlu0 %411
      %415 = vset.pattern.permute.xlu0 0
      %416 = vperm.xlu0 %415, %v390
      %v417 = vpop.permute.xlu0 %416
      %420 = vset.pattern.permute.xlu0 0
      %421 = vperm.xlu0 %420, %v391
      %v422 = vpop.permute.xlu0 %421
      %425 = vset.pattern.permute.xlu0 0
      %426 = vperm.xlu0 %425, %v392
      %v427 = vpop.permute.xlu0 %426
      %430 = vset.pattern.permute.xlu0 0
      %431 = vperm.xlu0 %430, %v393
      %v432 = vpop.permute.xlu0 %431
      %v434 = vadd.f32 %v378, %v397
      %v435 = vadd.f32 %v379, %v402
      %v436 = vadd.f32 %v380, %v407
      %v437 = vadd.f32 %v381, %v412
      %v438 = vadd.f32 %v382, %v417
      %v439 = vadd.f32 %v383, %v422
      %v440 = vadd.f32 %v384, %v427
      %v441 = vadd.f32 %v385, %v432
      %v442 = vmax.f32 %v434, 0.0
      %v443 = vmax.f32 %v435, 0.0
      %v444 = vmax.f32 %v436, 0.0
      %v445 = vmax.f32 %v437, 0.0
      %v446 = vmax.f32 %v438, 0.0
      %v447 = vmax.f32 %v439, 0.0
      %v448 = vmax.f32 %v440, 0.0
      %v449 = vmax.f32 %v441, 0.0
      %v450 = vld [vmem:[%s3] sm:$0xff]
      %v451 = vld [vmem:[%s3 + $0x8] sm:$0xff]
      %v452 = vld [vmem:[%s3 + $0x10] sm:$0xff]
      %v453 = vld [vmem:[%s3 + $0x18] sm:$0xff]
      %v454 = vld [vmem:[%s4] sm:$0xff]
      %v455 = vld [vmem:[%s4 + $0x8] sm:$0xff]
      %v456 = vld [vmem:[%s4 + $0x10] sm:$0xff]
      %v457 = vld [vmem:[%s4 + $0x18] sm:$0xff]
      %459 = vset.pattern.permute.xlu0 0
      %460 = vperm.xlu0 %459, %v454
      %v461 = vpop.permute.xlu0 %460
      %464 = vset.pattern.permute.xlu0 0
      %465 = vperm.xlu0 %464, %v455
      %v466 = vpop.permute.xlu0 %465
      %469 = vset.pattern.permute.xlu0 0
      %470 = vperm.xlu0 %469, %v456
      %v471 = vpop.permute.xlu0 %470
      %474 = vset.pattern.permute.xlu0 0
      %475 = vperm.xlu0 %474, %v457
      %v476 = vpop.permute.xlu0 %475
      %vm478 = vcmask 523264
      %v480 = vsel %vm478, %v450, 0
      %v483 = vsel %vm478, %v451, 0
      %v486 = vsel %vm478, %v452, 0
      %v489 = vsel %vm478, %v453, 0
      %491 = vmatprep.subr.mxu0 0.0
      %492 = vmatpush1.msra.mxu0 0.0
      %493 = vmatprep.subr.mxu0 0.0
      %494 = vmatpush1.msra.mxu0 0.0
      %495 = vmatprep.subr.mxu0 0.0
      %496 = vmatpush1.msra.mxu0 0.0
      %497 = vmatprep.subr.mxu0 0.0
      %498 = vmatpush1.msra.mxu0 0.0
      %499 = vmatprep.subr.mxu0 0.0
      %500 = vmatpush1.msra.mxu0 0.0
      %501 = vmatprep.subr.mxu0 0.0
      %502 = vmatpush1.msra.mxu0 0.0
      %503 = vmatprep.subr.mxu0 0.0
      %504 = vmatpush1.msra.mxu0 0.0
      %505 = vmatprep.subr.mxu0 0.0
      %506 = vmatpush1.msra.mxu0 0.0
      %507 = vmatprep.subr.mxu0 0.0
      %508 = vmatpush1.msra.mxu0 %v449
      %509 = vmatprep.subr.mxu0 0.0
      %510 = vmatpush1.msra.mxu0 %v448
      %511 = vmatprep.subr.mxu0 0.0
      %512 = vmatpush1.msra.mxu0 %v447
      %513 = vmatprep.subr.mxu0 0.0
      %514 = vmatpush1.msra.mxu0 %v446
      %515 = vmatprep.subr.mxu0 0.0
      %516 = vmatpush1.msra.mxu0 %v445
      %517 = vmatprep.subr.mxu0 0.0
      %518 = vmatpush1.msra.mxu0 %v444
      %519 = vmatprep.subr.mxu0 0.0
      %520 = vmatpush1.msra.mxu0 %v443
      %521 = vmatprep.subr.mxu0 0.0
      %522 = vmatpush1.msra.mxu0 %v442
      %523 = vmatprep.subr.mxu0 0.0
      %524 = vmatpush2.msra.mxu0 0.0
      %525 = vmatprep.subr.mxu0 0.0
      %526 = vmatpush2.msra.mxu0 0.0
      %527 = vmatprep.subr.mxu0 0.0
      %528 = vmatpush2.msra.mxu0 0.0
      %529 = vmatprep.subr.mxu0 0.0
      %530 = vmatpush2.msra.mxu0 0.0
      %531 = vmatprep.subr.mxu0 0.0
      %532 = vmatpush2.msra.mxu0 0.0
      %533 = vmatprep.subr.mxu0 0.0
      %534 = vmatpush2.msra.mxu0 0.0
      %535 = vmatprep.subr.mxu0 0.0
      %536 = vmatpush2.msra.mxu0 0.0
      %537 = vmatprep.subr.mxu0 0.0
      %538 = vmatpush2.msra.mxu0 0.0
      %539 = vmatprep.subr.mxu0 0.0
      %540 = vmatpush2.msra.mxu0 0.0
      %541 = vmatprep.subr.mxu0 0.0
      %542 = vmatpush2.msra.mxu0 0.0
      %543 = vmatprep.subr.mxu0 0.0
      %544 = vmatpush2.msra.mxu0 0.0
      %545 = vmatprep.subr.mxu0 0.0
      %546 = vmatpush2.msra.mxu0 0.0
      %547 = vmatprep.subr.mxu0 0.0
      %548 = vmatpush2.msra.mxu0 0.0
      %549 = vmatprep.subr.mxu0 0.0
      %550 = vmatpush2.msra.mxu0 0.0
      %551 = vmatprep.subr.mxu0 0.0
      %552 = vmatpush2.msra.mxu0 0.0
      %553 = vmatprep.subr.mxu0 0.0
      %554 = vmatpush2.msra.mxu0 0.0
      %555 = vmatprep.mubr.f32.mxu0 0.0
      %556 = vmatmul.mubr.f32.gmra.mxu0 %v480
      %v557 = vpop.f32.mrf.mxu0
      %v558 = vadd.f32 %v461, %v557
      %v559 = vpop.f32.mrf.mxu0
      %560 = vmatprep.mubr.f32.mxu0 0.0
      %561 = vmatmul.mubr.f32.gmra.mxu0 %v483
      %v562 = vpop.f32.mrf.mxu0
      %v563 = vadd.f32 %v466, %v562
      %v564 = vpop.f32.mrf.mxu0
      %565 = vmatprep.mubr.f32.mxu0 0.0
      %566 = vmatmul.mubr.f32.gmra.mxu0 %v486
      %v567 = vpop.f32.mrf.mxu0
      %v568 = vadd.f32 %v471, %v567
      %v569 = vpop.f32.mrf.mxu0
      %570 = vmatprep.mubr.f32.mxu0 0.0
      %571 = vmatmul.mubr.f32.gmra.mxu0 %v489
      %v572 = vpop.f32.mrf.mxu0
      %v573 = vadd.f32 %v476, %v572
      %v574 = vpop.f32.mrf.mxu0
      %575 = vdwg.mxu0
      %v576 = vmax.f32 %v558, 0.0
      %v577 = vmax.f32 %v563, 0.0
      %v578 = vmax.f32 %v568, 0.0
      %v579 = vmax.f32 %v573, 0.0
      %v580 = vld [vmem:[%s5] sm:$0xff]
      %v581 = vld [vmem:[%s5 + $0x8] sm:$0xff]
      %v582 = vld [vmem:[%s5 + $0x10] sm:$0xff]
      %v583 = vld [vmem:[%s5 + $0x18] sm:$0xff]
      %v584 = vld [vmem:[%s5 + $0x20] sm:$0xff]
      %v585 = vld [vmem:[%s5 + $0x28] sm:$0xff]
      %v586 = vld [vmem:[%s5 + $0x30] sm:$0xff]
      %v587 = vld [vmem:[%s5 + $0x38] sm:$0xff]
      %v588 = vld [vmem:[%s373] sm:$0xff]
      %v589 = vld [vmem:[%s373 + $0x8] sm:$0xff]
      %v590 = vld [vmem:[%s373 + $0x10] sm:$0xff]
      %v591 = vld [vmem:[%s373 + $0x18] sm:$0xff]
      %v592 = vld [vmem:[%s373 + $0x20] sm:$0xff]
      %v593 = vld [vmem:[%s373 + $0x28] sm:$0xff]
      %v594 = vld [vmem:[%s373 + $0x30] sm:$0xff]
      %v595 = vld [vmem:[%s373 + $0x38] sm:$0xff]
      %597 = vset.pattern.permute.xlu0 0
      %598 = vperm.xlu0 %597, %v588
      %v599 = vpop.permute.xlu0 %598
      %602 = vset.pattern.permute.xlu0 0
      %603 = vperm.xlu0 %602, %v589
      %v604 = vpop.permute.xlu0 %603
      %607 = vset.pattern.permute.xlu0 0
      %608 = vperm.xlu0 %607, %v590
      %v609 = vpop.permute.xlu0 %608
      %612 = vset.pattern.permute.xlu0 0
      %613 = vperm.xlu0 %612, %v591
      %v614 = vpop.permute.xlu0 %613
      %617 = vset.pattern.permute.xlu0 0
      %618 = vperm.xlu0 %617, %v592
      %v619 = vpop.permute.xlu0 %618
      %622 = vset.pattern.permute.xlu0 0
      %623 = vperm.xlu0 %622, %v593
      %v624 = vpop.permute.xlu0 %623
      %627 = vset.pattern.permute.xlu0 0
      %628 = vperm.xlu0 %627, %v594
      %v629 = vpop.permute.xlu0 %628
      %632 = vset.pattern.permute.xlu0 0
      %633 = vperm.xlu0 %632, %v595
      %v634 = vpop.permute.xlu0 %633
      %vm636 = vcmask 261120
      %v638 = vsel %vm636, %v580, 0
      %v641 = vsel %vm636, %v581, 0
      %v644 = vsel %vm636, %v582, 0
      %v647 = vsel %vm636, %v583, 0
      %v650 = vsel %vm636, %v584, 0
      %v653 = vsel %vm636, %v585, 0
      %v656 = vsel %vm636, %v586, 0
      %v659 = vsel %vm636, %v587, 0
      %661 = vmatprep.subr.mxu0 0.0
      %662 = vmatpush1.msra.mxu0 0.0
      %663 = vmatprep.subr.mxu0 0.0
      %664 = vmatpush1.msra.mxu0 0.0
      %665 = vmatprep.subr.mxu0 0.0
      %666 = vmatpush1.msra.mxu0 0.0
      %667 = vmatprep.subr.mxu0 0.0
      %668 = vmatpush1.msra.mxu0 0.0
      %669 = vmatprep.subr.mxu0 0.0
      %670 = vmatpush1.msra.mxu0 0.0
      %671 = vmatprep.subr.mxu0 0.0
      %672 = vmatpush1.msra.mxu0 0.0
      %673 = vmatprep.subr.mxu0 0.0
      %674 = vmatpush1.msra.mxu0 0.0
      %675 = vmatprep.subr.mxu0 0.0
      %676 = vmatpush1.msra.mxu0 0.0
      %677 = vmatprep.subr.mxu0 0.0
      %678 = vmatpush1.msra.mxu0 0.0
      %679 = vmatprep.subr.mxu0 0.0
      %680 = vmatpush1.msra.mxu0 0.0
      %681 = vmatprep.subr.mxu0 0.0
      %682 = vmatpush1.msra.mxu0 0.0
      %683 = vmatprep.subr.mxu0 0.0
      %684 = vmatpush1.msra.mxu0 0.0
      %685 = vmatprep.subr.mxu0 0.0
      %686 = vmatpush1.msra.mxu0 %v579
      %687 = vmatprep.subr.mxu0 0.0
      %688 = vmatpush1.msra.mxu0 %v578
      %689 = vmatprep.subr.mxu0 0.0
      %690 = vmatpush1.msra.mxu0 %v577
      %691 = vmatprep.subr.mxu0 0.0
      %692 = vmatpush1.msra.mxu0 %v576
      %693 = vmatprep.subr.mxu0 0.0
      %694 = vmatpush2.msra.mxu0 0.0
      %695 = vmatprep.subr.mxu0 0.0
      %696 = vmatpush2.msra.mxu0 0.0
      %697 = vmatprep.subr.mxu0 0.0
      %698 = vmatpush2.msra.mxu0 0.0
      %699 = vmatprep.subr.mxu0 0.0
      %700 = vmatpush2.msra.mxu0 0.0
      %701 = vmatprep.subr.mxu0 0.0
      %702 = vmatpush2.msra.mxu0 0.0
      %703 = vmatprep.subr.mxu0 0.0
      %704 = vmatpush2.msra.mxu0 0.0
      %705 = vmatprep.subr.mxu0 0.0
      %706 = vmatpush2.msra.mxu0 0.0
      %707 = vmatprep.subr.mxu0 0.0
      %708 = vmatpush2.msra.mxu0 0.0
      %709 = vmatprep.subr.mxu0 0.0
      %710 = vmatpush2.msra.mxu0 0.0
      %711 = vmatprep.subr.mxu0 0.0
      %712 = vmatpush2.msra.mxu0 0.0
      %713 = vmatprep.subr.mxu0 0.0
      %714 = vmatpush2.msra.mxu0 0.0
      %715 = vmatprep.subr.mxu0 0.0
      %716 = vmatpush2.msra.mxu0 0.0
      %717 = vmatprep.subr.mxu0 0.0
      %718 = vmatpush2.msra.mxu0 0.0
      %719 = vmatprep.subr.mxu0 0.0
      %720 = vmatpush2.msra.mxu0 0.0
      %721 = vmatprep.subr.mxu0 0.0
      %722 = vmatpush2.msra.mxu0 0.0
      %723 = vmatprep.subr.mxu0 0.0
      %724 = vmatpush2.msra.mxu0 0.0
      %725 = vmatprep.mubr.f32.mxu0 0.0
      %726 = vmatmul.mubr.f32.gmra.mxu0 %v638
      %v727 = vpop.f32.mrf.mxu0
      %v728 = vadd.f32 %v599, %v727
      %v729 = vpop.f32.mrf.mxu0
      %730 = vmatprep.mubr.f32.mxu0 0.0
      %731 = vmatmul.mubr.f32.gmra.mxu0 %v641
      %v732 = vpop.f32.mrf.mxu0
      %v733 = vadd.f32 %v604, %v732
      %v734 = vpop.f32.mrf.mxu0
      %735 = vmatprep.mubr.f32.mxu0 0.0
      %736 = vmatmul.mubr.f32.gmra.mxu0 %v644
      %v737 = vpop.f32.mrf.mxu0
      %v738 = vadd.f32 %v609, %v737
      %v739 = vpop.f32.mrf.mxu0
      %740 = vmatprep.mubr.f32.mxu0 0.0
      %741 = vmatmul.mubr.f32.gmra.mxu0 %v647
      %v742 = vpop.f32.mrf.mxu0
      %v743 = vadd.f32 %v614, %v742
      %v744 = vpop.f32.mrf.mxu0
      %745 = vmatprep.mubr.f32.mxu0 0.0
      %746 = vmatmul.mubr.f32.gmra.mxu0 %v650
      %v747 = vpop.f32.mrf.mxu0
      %v748 = vadd.f32 %v619, %v747
      %v749 = vpop.f32.mrf.mxu0
      %750 = vmatprep.mubr.f32.mxu0 0.0
      %751 = vmatmul.mubr.f32.gmra.mxu0 %v653
      %v752 = vpop.f32.mrf.mxu0
      %v753 = vadd.f32 %v624, %v752
      %v754 = vpop.f32.mrf.mxu0
      %755 = vmatprep.mubr.f32.mxu0 0.0
      %756 = vmatmul.mubr.f32.gmra.mxu0 %v656
      %v757 = vpop.f32.mrf.mxu0
      %v758 = vadd.f32 %v629, %v757
      %v759 = vpop.f32.mrf.mxu0
      %760 = vmatprep.mubr.f32.mxu0 0.0
      %761 = vmatmul.mubr.f32.gmra.mxu0 %v659
      %v762 = vpop.f32.mrf.mxu0
      %v763 = vadd.f32 %v634, %v762
      %v764 = vpop.f32.mrf.mxu0
      %765 = vdwg.mxu0
      %v766 = vmax.f32 %v728, 0.0
      %v767 = vmax.f32 %v733, 0.0
      %v768 = vmax.f32 %v738, 0.0
      %v769 = vmax.f32 %v743, 0.0
      %v770 = vmax.f32 %v748, 0.0
      %v771 = vmax.f32 %v753, 0.0
      %v772 = vmax.f32 %v758, 0.0
      %v773 = vmax.f32 %v763, 0.0
      %v774 = vld [vmem:[%s6] sm:$0xff]
      %v775 = vld [vmem:[%s6 + $0x8] sm:$0xff]
      %v776 = vld [vmem:[%s6 + $0x10] sm:$0xff]
      %v777 = vld [vmem:[%s6 + $0x18] sm:$0xff]
      %v778 = vld [vmem:[%s7] sm:$0xff]
      %v779 = vld [vmem:[%s7 + $0x8] sm:$0xff]
      %v780 = vld [vmem:[%s7 + $0x10] sm:$0xff]
      %v781 = vld [vmem:[%s7 + $0x18] sm:$0xff]
      %783 = vset.pattern.permute.xlu0 0
      %784 = vperm.xlu0 %783, %v778
      %v785 = vpop.permute.xlu0 %784
      %788 = vset.pattern.permute.xlu0 0
      %789 = vperm.xlu0 %788, %v779
      %v790 = vpop.permute.xlu0 %789
      %793 = vset.pattern.permute.xlu0 0
      %794 = vperm.xlu0 %793, %v780
      %v795 = vpop.permute.xlu0 %794
      %798 = vset.pattern.permute.xlu0 0
      %799 = vperm.xlu0 %798, %v781
      %v800 = vpop.permute.xlu0 %799
      %v803 = vsel %vm478, %v774, 0
      %v806 = vsel %vm478, %v775, 0
      %v809 = vsel %vm478, %v776, 0
      %v812 = vsel %vm478, %v777, 0
      %814 = vmatprep.subr.mxu0 0.0
      %815 = vmatpush1.msra.mxu0 0.0
      %816 = vmatprep.subr.mxu0 0.0
      %817 = vmatpush1.msra.mxu0 0.0
      %818 = vmatprep.subr.mxu0 0.0
      %819 = vmatpush1.msra.mxu0 0.0
      %820 = vmatprep.subr.mxu0 0.0
      %821 = vmatpush1.msra.mxu0 0.0
      %822 = vmatprep.subr.mxu0 0.0
      %823 = vmatpush1.msra.mxu0 0.0
      %824 = vmatprep.subr.mxu0 0.0
      %825 = vmatpush1.msra.mxu0 0.0
      %826 = vmatprep.subr.mxu0 0.0
      %827 = vmatpush1.msra.mxu0 0.0
      %828 = vmatprep.subr.mxu0 0.0
      %829 = vmatpush1.msra.mxu0 0.0
      %830 = vmatprep.subr.mxu0 0.0
      %831 = vmatpush1.msra.mxu0 %v773
      %832 = vmatprep.subr.mxu0 0.0
      %833 = vmatpush1.msra.mxu0 %v772
      %834 = vmatprep.subr.mxu0 0.0
      %835 = vmatpush1.msra.mxu0 %v771
      %836 = vmatprep.subr.mxu0 0.0
      %837 = vmatpush1.msra.mxu0 %v770
      %838 = vmatprep.subr.mxu0 0.0
      %839 = vmatpush1.msra.mxu0 %v769
      %840 = vmatprep.subr.mxu0 0.0
      %841 = vmatpush1.msra.mxu0 %v768
      %842 = vmatprep.subr.mxu0 0.0
      %843 = vmatpush1.msra.mxu0 %v767
      %844 = vmatprep.subr.mxu0 0.0
      %845 = vmatpush1.msra.mxu0 %v766
      %846 = vmatprep.subr.mxu0 0.0
      %847 = vmatpush2.msra.mxu0 0.0
      %848 = vmatprep.subr.mxu0 0.0
      %849 = vmatpush2.msra.mxu0 0.0
      %850 = vmatprep.subr.mxu0 0.0
      %851 = vmatpush2.msra.mxu0 0.0
      %852 = vmatprep.subr.mxu0 0.0
      %853 = vmatpush2.msra.mxu0 0.0
      %854 = vmatprep.subr.mxu0 0.0
      %855 = vmatpush2.msra.mxu0 0.0
      %856 = vmatprep.subr.mxu0 0.0
      %857 = vmatpush2.msra.mxu0 0.0
      %858 = vmatprep.subr.mxu0 0.0
      %859 = vmatpush2.msra.mxu0 0.0
      %860 = vmatprep.subr.mxu0 0.0
      %861 = vmatpush2.msra.mxu0 0.0
      %862 = vmatprep.subr.mxu0 0.0
      %863 = vmatpush2.msra.mxu0 0.0
      %864 = vmatprep.subr.mxu0 0.0
      %865 = vmatpush2.msra.mxu0 0.0
      %866 = vmatprep.subr.mxu0 0.0
      %867 = vmatpush2.msra.mxu0 0.0
      %868 = vmatprep.subr.mxu0 0.0
      %869 = vmatpush2.msra.mxu0 0.0
      %870 = vmatprep.subr.mxu0 0.0
      %871 = vmatpush2.msra.mxu0 0.0
      %872 = vmatprep.subr.mxu0 0.0
      %873 = vmatpush2.msra.mxu0 0.0
      %874 = vmatprep.subr.mxu0 0.0
      %875 = vmatpush2.msra.mxu0 0.0
      %876 = vmatprep.subr.mxu0 0.0
      %877 = vmatpush2.msra.mxu0 0.0
      %878 = vmatprep.mubr.f32.mxu0 0.0
      %879 = vmatmul.mubr.f32.gmra.mxu0 %v803
      %v880 = vpop.f32.mrf.mxu0
      %v881 = vadd.f32 %v785, %v880
      %v882 = vpop.f32.mrf.mxu0
      %883 = vmatprep.mubr.f32.mxu0 0.0
      %884 = vmatmul.mubr.f32.gmra.mxu0 %v806
      %v885 = vpop.f32.mrf.mxu0
      %v886 = vadd.f32 %v790, %v885
      %v887 = vpop.f32.mrf.mxu0
      %888 = vmatprep.mubr.f32.mxu0 0.0
      %889 = vmatmul.mubr.f32.gmra.mxu0 %v809
      %v890 = vpop.f32.mrf.mxu0
      %v891 = vadd.f32 %v795, %v890
      %v892 = vpop.f32.mrf.mxu0
      %893 = vmatprep.mubr.f32.mxu0 0.0
      %894 = vmatmul.mubr.f32.gmra.mxu0 %v812
      %v895 = vpop.f32.mrf.mxu0
      %v896 = vadd.f32 %v800, %v895
      %v897 = vpop.f32.mrf.mxu0
      %898 = vdwg.mxu0
      %v899 = vmax.f32 %v881, 0.0
      %v900 = vmax.f32 %v886, 0.0
      %v901 = vmax.f32 %v891, 0.0
      %v902 = vmax.f32 %v896, 0.0
      %v903 = vld [vmem:[%s8] sm:$0x7]
      %v904 = vld [vmem:[%s9] sm:$0x7]
      %906 = vset.pattern.permute.xlu0 0
      %907 = vperm.xlu0 %906, %v904
      %v908 = vpop.permute.xlu0 %907
      %v911 = vsel %vm636, %v903, 0
      %913 = vmatprep.subr.mxu0 0.0
      %914 = vmatpush1.msra.mxu0 0.0
      %915 = vmatprep.subr.mxu0 0.0
      %916 = vmatpush1.msra.mxu0 0.0
      %917 = vmatprep.subr.mxu0 0.0
      %918 = vmatpush1.msra.mxu0 0.0
      %919 = vmatprep.subr.mxu0 0.0
      %920 = vmatpush1.msra.mxu0 0.0
      %921 = vmatprep.subr.mxu0 0.0
      %922 = vmatpush1.msra.mxu0 0.0
      %923 = vmatprep.subr.mxu0 0.0
      %924 = vmatpush1.msra.mxu0 0.0
      %925 = vmatprep.subr.mxu0 0.0
      %926 = vmatpush1.msra.mxu0 0.0
      %927 = vmatprep.subr.mxu0 0.0
      %928 = vmatpush1.msra.mxu0 0.0
      %929 = vmatprep.subr.mxu0 0.0
      %930 = vmatpush1.msra.mxu0 0.0
      %931 = vmatprep.subr.mxu0 0.0
      %932 = vmatpush1.msra.mxu0 0.0
      %933 = vmatprep.subr.mxu0 0.0
      %934 = vmatpush1.msra.mxu0 0.0
      %935 = vmatprep.subr.mxu0 0.0
      %936 = vmatpush1.msra.mxu0 0.0
      %937 = vmatprep.subr.mxu0 0.0
      %938 = vmatpush1.msra.mxu0 %v902
      %939 = vmatprep.subr.mxu0 0.0
      %940 = vmatpush1.msra.mxu0 %v901
      %941 = vmatprep.subr.mxu0 0.0
      %942 = vmatpush1.msra.mxu0 %v900
      %943 = vmatprep.subr.mxu0 0.0
      %944 = vmatpush1.msra.mxu0 %v899
      %945 = vmatprep.subr.mxu0 0.0
      %946 = vmatpush2.msra.mxu0 0.0
      %947 = vmatprep.subr.mxu0 0.0
      %948 = vmatpush2.msra.mxu0 0.0
      %949 = vmatprep.subr.mxu0 0.0
      %950 = vmatpush2.msra.mxu0 0.0
      %951 = vmatprep.subr.mxu0 0.0
      %952 = vmatpush2.msra.mxu0 0.0
      %953 = vmatprep.subr.mxu0 0.0
      %954 = vmatpush2.msra.mxu0 0.0
      %955 = vmatprep.subr.mxu0 0.0
      %956 = vmatpush2.msra.mxu0 0.0
      %957 = vmatprep.subr.mxu0 0.0
      %958 = vmatpush2.msra.mxu0 0.0
      %959 = vmatprep.subr.mxu0 0.0
      %960 = vmatpush2.msra.mxu0 0.0
      %961 = vmatprep.subr.mxu0 0.0
      %962 = vmatpush2.msra.mxu0 0.0
      %963 = vmatprep.subr.mxu0 0.0
      %964 = vmatpush2.msra.mxu0 0.0
      %965 = vmatprep.subr.mxu0 0.0
      %966 = vmatpush2.msra.mxu0 0.0
      %967 = vmatprep.subr.mxu0 0.0
      %968 = vmatpush2.msra.mxu0 0.0
      %969 = vmatprep.subr.mxu0 0.0
      %970 = vmatpush2.msra.mxu0 0.0
      %971 = vmatprep.subr.mxu0 0.0
      %972 = vmatpush2.msra.mxu0 0.0
      %973 = vmatprep.subr.mxu0 0.0
      %974 = vmatpush2.msra.mxu0 0.0
      %975 = vmatprep.subr.mxu0 0.0
      %976 = vmatpush2.msra.mxu0 0.0
      %977 = vmatprep.mubr.f32.mxu0 0.0
      %978 = vmatmul.mubr.f32.gmra.mxu0 %v911
      %v979 = vpop.f32.mrf.mxu0
      %v980 = vadd.f32 %v908, %v979
      %v981 = vpop.f32.mrf.mxu0
      %982 = vdwg.mxu0
      %vm983 = vcmask 518144
      %984 = vst.msk [vmem:[%s377] sm:$0x7] %vm983, %v980
      %p985 = scmp.lt.s32.totalorder %s21, 1
      %s986 = scalar_select %p985, %s21, 1
      %s987 = smul.addr %s986, 4
      %s988 = scalar_lea.vmem %s10, %s987
      // Predicated region
      $region61: #{fold_forward.1} parent=59 // pred_check
        %p989 = pneg %p259
      $region62: #{fold_forward.1} parent=59 // pred_check_branch
        %991 = sbr.rel (%p989) target = $region64
      $region63: #{fold_forward.1} parent=59 // pred_region
        _
      $region64: #{fold_forward.1} parent=59 // pred_fallthru
        _
    $region60: #{fold_forward.1} parent=5 // pred_fallthru
      _
    %p992 = scmp.le.s32.totalorder 2, %s16
    // Predicated region
    $region65: #{fold_forward.1} parent=5 // pred_check
      %p993 = pneg %p992
    $region66: #{fold_forward.1} parent=5 // pred_check_branch
      %995 = sbr.rel (%p993) target = $region68
    $region67: #{fold_forward.1} parent=5 // pred_region
      %s996 = ssub.s32 %s16, 2
      // Predicated region
      $region69: #{fold_forward.1} parent=67 // pred_check
        %p997 = pneg %p265
      $region70: #{fold_forward.1} parent=67 // pred_check_branch
        %999 = sbr.rel (%p997) target = $region72
      $region71: #{fold_forward.1} parent=67 // pred_region
        %p1000 = scmp.lt.s32.totalorder %s22, 1
        %s1001 = scalar_select %p1000, %s22, 1
        %s1002 = smul.addr %s1001, 4
        %s1003 = scalar_lea.vmem %s10, %s1002
      $region72: #{fold_forward.1} parent=67 // pred_fallthru
        _
    $region68: #{fold_forward.1} parent=5 // pred_fallthru
      _
  $region6: #{fold_forward.1} parent=0 // loop_footer
    %s20 = sadd.s32 1, %s16
  $region7: #{fold_forward.1} parent=0 // loop_footer_branch
    %15 = sbr.rel target = $region3
  $region8: #{fold_forward.1} parent=0 // loop_exit
    _

</llo_original>
